<compile_context>
chip_gen: v7x
topology: tpu7x:2x2x1
jax: 0.10.0
libtpu: 0.0.40
codegen_flags: <defaults>
</compile_context>

<pallas_src>
import functools

import numpy as np

import jax
import jax.numpy as jnp
from jax.experimental import pallas as pl
from jax.experimental.pallas import tpu as pltpu


def _fire_kernel(x_ref, wsq_ref, bsq_ref, wexp_ref, bexp_ref, mask_ref,
                 out_ref, *, W):
    # One lane-batched block: Nb whole images flattened onto the lane axis.
    #   x_ref   : (Cin, L)      bf16, L = Nb*H*W
    #   wsq_ref : (Cs, Cin)     bf16     bsq_ref : (Cs, 1)   f32
    #   wexp_ref: (Cout, 9*Cs)  bf16     bexp_ref: (Cout, 1) f32
    #   mask_ref: (9, L)        f32  (precomputed padding=1 validity masks)
    #   out_ref : (Cout, L)     f32
    L = x_ref.shape[1]

    # ---- squeeze 1x1 conv + bias + ReLU: one MXU matmul, f32 accumulate ----
    # (On v5e a K=Cin=4 matmul is mostly MXU padding; a VPU broadcast-FMA
    #  variant would also work, but the MXU call is correct on all gens.)
    s = jnp.dot(wsq_ref[...], x_ref[...], preferred_element_type=jnp.float32)
    s = jnp.maximum(s + bsq_ref[...], 0.0)                       # (Cs, L) f32

    # ---- in-register im2col: 9 rolled + masked copies of s (no VMEM trip) --
    # Rolls run on the XLU slot; masks are preloaded constants, so the only
    # per-tap VALU work is one broadcasted multiply.
    parts = []
    for dy in range(3):
        for dx in range(3):
            tap = dy * 3 + dx
            off = (dy - 1) * W + (dx - 1)
            if off == 0:
                parts.append(s)                                  # center tap
            else:
                shifted = pltpu.roll(s, shift=(-off) % L, axis=1)
                parts.append(shifted * mask_ref[tap:tap + 1, :])
    # f32 pieces are 8-sublane aligned -> cheap concat; single cast to bf16.
    a = jnp.concatenate(parts, axis=0).astype(jnp.bfloat16)      # (9*Cs, L)

    # ---- fused expand1x1 + expand3x3: single K=9*Cs MXU matmul ----
    e = jnp.dot(wexp_ref[...], a, preferred_element_type=jnp.float32)
    out_ref[...] = jnp.maximum(e + bexp_ref[...], 0.0).astype(out_ref.dtype)


def fire_forward(x_nchw, wsq, bsq, w1, b1, w3, b3, *, max_lanes_per_block=512):
    """x_nchw: (N, Cin, H, W) float32.  Weights in PyTorch layout:
       wsq (Cs, Cin, 1, 1), w1 (C1, Cs, 1, 1), w3 (C3, Cs, 3, 3)."""
    N, Cin, H, W = x_nchw.shape
    Cs = wsq.shape[0]
    C1 = w1.shape[0]
    C3 = w3.shape[0]
    Cout = C1 + C3
    HW = H * W
    K = 9 * Cs

    # ---- how many whole images share one grid step (lane batching) ----------
    # Bigger blocks amortize the ~0.35us/step overhead and reuse the packed
    # weights; capped so the in-register im2col stays well inside the vreg
    # file.  (On v7x one may prefer >=2 blocks so both TensorCores get work;
    # at tiny N either choice is in the noise.)
    cap = max(HW, max_lanes_per_block)
    nb = 1
    for d in range(1, N + 1):
        if N % d == 0 and d * HW <= cap:
            nb = d
    n_blocks = N // nb
    L = nb * HW

    # ---- trace-time layout plumbing (all outside the kernel) ---------------
    # Channels-major with the batch folded onto the lane axis: (Cin, N*HW).
    x_cm = jnp.transpose(x_nchw, (1, 0, 2, 3)).reshape(Cin, N * HW)
    x_cm = x_cm.astype(jnp.bfloat16)

    wsq_m = wsq[:, :, 0, 0].astype(jnp.bfloat16)                 # (Cs, Cin)
    bsq_m = bsq.reshape(Cs, 1).astype(jnp.float32)

    # Packed expand weight (Cout, 9*Cs): rows 0:C1 are the 1x1 weights placed
    # in the center tap (tap 4), rows C1:Cout are the flattened 3x3 weights
    # indexed [c, (dy*3+dx)*Cs + k] to match the im2col tap order.
    w3_flat = jnp.transpose(w3, (0, 2, 3, 1)).reshape(C3, K)
    w1_center = jnp.zeros((C1, K), jnp.float32)
    w1_center = w1_center.at[:, 4 * Cs:5 * Cs].set(w1[:, :, 0, 0])
    wexp = jnp.concatenate([w1_center, w3_flat.astype(jnp.float32)], axis=0)
    wexp = wexp.astype(jnp.bfloat16)                             # (Cout, K)
    bexp = jnp.concatenate([b1, b3]).reshape(Cout, 1).astype(jnp.float32)

    # 9 padding=1 validity masks as trace-time constants, tiled across the
    # nb images of one block.  They also zero any roll that crosses an image
    # boundary, which is what makes lane-axis batching correct.
    p = np.arange(HW)
    py, px = p // W, p % W
    mrows = []
    for dy in range(3):
        for dx in range(3):
            oy, ox = dy - 1, dx - 1
            valid = ((px + ox >= 0) & (px + ox < W) &
                     (py + oy >= 0) & (py + oy < H))
            mrows.append(valid.astype(np.float32))
    masks = jnp.asarray(np.tile(np.stack(mrows), (1, nb)))       # (9, L) f32

    kernel = functools.partial(_fire_kernel, W=W)

    out_cm = pl.pallas_call(
        kernel,
        out_shape=jax.ShapeDtypeStruct((Cout, N * HW), jnp.float32),
        grid_spec=pltpu.PrefetchScalarGridSpec(
            num_scalar_prefetch=0,
            grid=(n_blocks,),
            in_specs=[
                pl.BlockSpec((Cin, L), lambda i: (0, i)),
                pl.BlockSpec((Cs, Cin), lambda i: (0, 0)),
                pl.BlockSpec((Cs, 1), lambda i: (0, 0)),
                pl.BlockSpec((Cout, K), lambda i: (0, 0)),
                pl.BlockSpec((Cout, 1), lambda i: (0, 0)),
                pl.BlockSpec((9, L), lambda i: (0, 0)),
            ],
            out_specs=pl.BlockSpec((Cout, L), lambda i: (0, i)),
        ),
        compiler_params=pltpu.CompilerParams(
            dimension_semantics=("parallel",)),
    )(x_cm, wsq_m, bsq_m, wexp, bexp, masks)

    # Back to PyTorch NCHW convention.
    return jnp.transpose(out_cm.reshape(Cout, N, H, W), (1, 0, 2, 3))


def _reference(x_nchw, wsq, bsq, w1, b1, w3, b3):
    """Pure-JAX f32 reference (lax.conv) for a correctness check."""
    dn = jax.lax.conv_dimension_numbers(x_nchw.shape, wsq.shape,
                                        ("NCHW", "OIHW", "NCHW"))
    s = jax.lax.conv_general_dilated(x_nchw, wsq, (1, 1), "VALID",
                                     dimension_numbers=dn)
    s = jax.nn.relu(s + bsq[None, :, None, None])
    e1 = jax.lax.conv_general_dilated(s, w1, (1, 1), "VALID",
                                      dimension_numbers=dn)
    e1 = jax.nn.relu(e1 + b1[None, :, None, None])
    e3 = jax.lax.conv_general_dilated(s, w3, (1, 1), ((1, 1), (1, 1)),
                                      dimension_numbers=dn)
    e3 = jax.nn.relu(e3 + b3[None, :, None, None])
    return jnp.concatenate([e1, e3], axis=1)


if __name__ == "__main__":
    # Fire(inplanes=4, squeeze_planes=8, expand1x1_planes=16, expand3x3_planes=16)
    N, Cin, H, W = 2, 4, 16, 16
    Cs, C1, C3 = 8, 16, 16

    key = jax.random.PRNGKey(0)
    ks = jax.random.split(key, 7)
    x = jax.random.normal(ks[0], (N, Cin, H, W), jnp.float32)
    wsq = jax.random.normal(ks[1], (Cs, Cin, 1, 1), jnp.float32) * 0.1
    bsq = jax.random.normal(ks[2], (Cs,), jnp.float32) * 0.1
    w1 = jax.random.normal(ks[3], (C1, Cs, 1, 1), jnp.float32) * 0.1
    b1 = jax.random.normal(ks[4], (C1,), jnp.float32) * 0.1
    w3 = jax.random.normal(ks[5], (C3, Cs, 3, 3), jnp.float32) * 0.1
    b3 = jax.random.normal(ks[6], (C3,), jnp.float32) * 0.1

    out = jax.block_until_ready(fire_forward(x, wsq, bsq, w1, b1, w3, b3))
    ref = _reference(x, wsq, bsq, w1, b1, w3, b3)

    assert out.shape == (N, C1 + C3, H, W), out.shape
    # bf16 MXU operands (f32 accumulation) vs f32 reference -> loosened tol.
    assert jnp.allclose(out, ref, atol=5e-2, rtol=5e-2), \
        float(jnp.max(jnp.abs(out - ref)))

    print("KERNEL_OK")
</pallas_src>

<mosaic_0001>
module attributes {stable_mosaic.version = 11 : i64} {
  func.func @_fire_kernel(%arg0: i32, %arg1: memref<4x512xbf16, #tpu.memory_space<vmem>>, %arg2: memref<8x4xbf16, #tpu.memory_space<vmem>>, %arg3: memref<8x1xf32, #tpu.memory_space<vmem>>, %arg4: memref<32x72xbf16, #tpu.memory_space<vmem>>, %arg5: memref<32x1xf32, #tpu.memory_space<vmem>>, %arg6: memref<9x512xf32, #tpu.memory_space<vmem>>, %arg7: memref<32x512xf32, #tpu.memory_space<vmem>>) attributes {dimension_semantics = [#tpu.dimension_semantics<parallel>], iteration_bounds = array<i64: 1>, scalar_prefetch = 0 : i64, scratch_operands = 0 : i64, tpu.core_type = #tpu.core_type<tc>, window_params = [{transform_indices = @transform_0, window_bounds = array<i64: 4, 512>}, {pipeline_mode = #tpu.pipeline_mode<synchronous>, transform_indices = @transform_1, window_bounds = array<i64: 8, 4>}, {pipeline_mode = #tpu.pipeline_mode<synchronous>, transform_indices = @transform_2, window_bounds = array<i64: 8, 1>}, {pipeline_mode = #tpu.pipeline_mode<synchronous>, transform_indices = @transform_3, window_bounds = array<i64: 32, 72>}, {pipeline_mode = #tpu.pipeline_mode<synchronous>, transform_indices = @transform_4, window_bounds = array<i64: 32, 1>}, {pipeline_mode = #tpu.pipeline_mode<synchronous>, transform_indices = @transform_5, window_bounds = array<i64: 9, 512>}, {transform_indices = @transform_6, window_bounds = array<i64: 32, 512>}]} {
    %c0 = arith.constant 0 : index
    %c0_0 = arith.constant 0 : index
    %0 = vector.load %arg2[%c0, %c0_0] : memref<8x4xbf16, #tpu.memory_space<vmem>>, vector<8x4xbf16>
    %c0_1 = arith.constant 0 : index
    %c0_2 = arith.constant 0 : index
    %1 = vector.load %arg1[%c0_1, %c0_2] : memref<4x512xbf16, #tpu.memory_space<vmem>>, vector<4x512xbf16>
    %cst = arith.constant dense<0.000000e+00> : vector<8x512xf32>
    %2 = tpu.matmul %0, %1, %cst {dimension_numbers = #tpu.dot_dimension_numbers<[1], [0], [0], [1], [0, 0, 1, 1], [], []>} : vector<8x4xbf16>, vector<4x512xbf16>, vector<8x512xf32> -> vector<8x512xf32>
    %c0_3 = arith.constant 0 : index
    %c0_4 = arith.constant 0 : index
    %3 = vector.load %arg3[%c0_3, %c0_4] : memref<8x1xf32, #tpu.memory_space<vmem>>, vector<8x1xf32>
    %4 = vector.broadcast %3 : vector<8x1xf32> to vector<8x512xf32>
    %5 = arith.addf %2, %4 : vector<8x512xf32>
    %cst_5 = arith.constant 0.000000e+00 : f32
    %6 = vector.broadcast %cst_5 : f32 to vector<8x512xf32>
    %7 = arith.maximumf %5, %6 : vector<8x512xf32>
    %c17_i32 = arith.constant 17 : i32
    %8 = tpu.dynamic_rotate %7 by %c17_i32 dim 1 : vector<8x512xf32>, i32 -> vector<8x512xf32>
    %c0_6 = arith.constant 0 : index
    %c0_7 = arith.constant 0 : index
    %9 = vector.load %arg6[%c0_6, %c0_7] : memref<9x512xf32, #tpu.memory_space<vmem>>, vector<1x512xf32>
    %10 = vector.broadcast %9 : vector<1x512xf32> to vector<8x512xf32>
    %11 = arith.mulf %8, %10 : vector<8x512xf32>
    %c16_i32 = arith.constant 16 : i32
    %12 = tpu.dynamic_rotate %7 by %c16_i32 dim 1 : vector<8x512xf32>, i32 -> vector<8x512xf32>
    %c1 = arith.constant 1 : index
    %c0_8 = arith.constant 0 : index
    %13 = vector.load %arg6[%c1, %c0_8] : memref<9x512xf32, #tpu.memory_space<vmem>>, vector<1x512xf32>
    %14 = vector.broadcast %13 : vector<1x512xf32> to vector<8x512xf32>
    %15 = arith.mulf %12, %14 : vector<8x512xf32>
    %c15_i32 = arith.constant 15 : i32
    %16 = tpu.dynamic_rotate %7 by %c15_i32 dim 1 : vector<8x512xf32>, i32 -> vector<8x512xf32>
    %c2 = arith.constant 2 : index
    %c0_9 = arith.constant 0 : index
    %17 = vector.load %arg6[%c2, %c0_9] : memref<9x512xf32, #tpu.memory_space<vmem>>, vector<1x512xf32>
    %18 = vector.broadcast %17 : vector<1x512xf32> to vector<8x512xf32>
    %19 = arith.mulf %16, %18 : vector<8x512xf32>
    %c1_i32 = arith.constant 1 : i32
    %20 = tpu.dynamic_rotate %7 by %c1_i32 dim 1 : vector<8x512xf32>, i32 -> vector<8x512xf32>
    %c3 = arith.constant 3 : index
    %c0_10 = arith.constant 0 : index
    %21 = vector.load %arg6[%c3, %c0_10] : memref<9x512xf32, #tpu.memory_space<vmem>>, vector<1x512xf32>
    %22 = vector.broadcast %21 : vector<1x512xf32> to vector<8x512xf32>
    %23 = arith.mulf %20, %22 : vector<8x512xf32>
    %c511_i32 = arith.constant 511 : i32
    %24 = tpu.dynamic_rotate %7 by %c511_i32 dim 1 : vector<8x512xf32>, i32 -> vector<8x512xf32>
    %c5 = arith.constant 5 : index
    %c0_11 = arith.constant 0 : index
    %25 = vector.load %arg6[%c5, %c0_11] : memref<9x512xf32, #tpu.memory_space<vmem>>, vector<1x512xf32>
    %26 = vector.broadcast %25 : vector<1x512xf32> to vector<8x512xf32>
    %27 = arith.mulf %24, %26 : vector<8x512xf32>
    %c497_i32 = arith.constant 497 : i32
    %28 = tpu.dynamic_rotate %7 by %c497_i32 dim 1 : vector<8x512xf32>, i32 -> vector<8x512xf32>
    %c6 = arith.constant 6 : index
    %c0_12 = arith.constant 0 : index
    %29 = vector.load %arg6[%c6, %c0_12] : memref<9x512xf32, #tpu.memory_space<vmem>>, vector<1x512xf32>
    %30 = vector.broadcast %29 : vector<1x512xf32> to vector<8x512xf32>
    %31 = arith.mulf %28, %30 : vector<8x512xf32>
    %c496_i32 = arith.constant 496 : i32
    %32 = tpu.dynamic_rotate %7 by %c496_i32 dim 1 : vector<8x512xf32>, i32 -> vector<8x512xf32>
    %c7 = arith.constant 7 : index
    %c0_13 = arith.constant 0 : index
    %33 = vector.load %arg6[%c7, %c0_13] : memref<9x512xf32, #tpu.memory_space<vmem>>, vector<1x512xf32>
    %34 = vector.broadcast %33 : vector<1x512xf32> to vector<8x512xf32>
    %35 = arith.mulf %32, %34 : vector<8x512xf32>
    %c495_i32 = arith.constant 495 : i32
    %36 = tpu.dynamic_rotate %7 by %c495_i32 dim 1 : vector<8x512xf32>, i32 -> vector<8x512xf32>
    %c8 = arith.constant 8 : index
    %c0_14 = arith.constant 0 : index
    %37 = vector.load %arg6[%c8, %c0_14] : memref<9x512xf32, #tpu.memory_space<vmem>>, vector<1x512xf32>
    %38 = vector.broadcast %37 : vector<1x512xf32> to vector<8x512xf32>
    %39 = arith.mulf %36, %38 : vector<8x512xf32>
    %40 = tpu.concatenate %11, %15, %19, %23, %7, %27, %31, %35, %39 in 0 : vector<8x512xf32>, vector<8x512xf32>, vector<8x512xf32>, vector<8x512xf32>, vector<8x512xf32>, vector<8x512xf32>, vector<8x512xf32>, vector<8x512xf32>, vector<8x512xf32> -> vector<72x512xf32>
    %41 = arith.truncf %40 : vector<72x512xf32> to vector<72x512xbf16>
    %c0_15 = arith.constant 0 : index
    %c0_16 = arith.constant 0 : index
    %42 = vector.load %arg4[%c0_15, %c0_16] : memref<32x72xbf16, #tpu.memory_space<vmem>>, vector<32x72xbf16>
    %cst_17 = arith.constant dense<0.000000e+00> : vector<32x512xf32>
    %43 = tpu.matmul %42, %41, %cst_17 {dimension_numbers = #tpu.dot_dimension_numbers<[1], [0], [0], [1], [0, 0, 1, 1], [], []>} : vector<32x72xbf16>, vector<72x512xbf16>, vector<32x512xf32> -> vector<32x512xf32>
    %c0_18 = arith.constant 0 : index
    %c0_19 = arith.constant 0 : index
    %44 = vector.load %arg5[%c0_18, %c0_19] : memref<32x1xf32, #tpu.memory_space<vmem>>, vector<32x1xf32>
    %45 = vector.broadcast %44 : vector<32x1xf32> to vector<32x512xf32>
    %46 = arith.addf %43, %45 : vector<32x512xf32>
    %cst_20 = arith.constant 0.000000e+00 : f32
    %47 = vector.broadcast %cst_20 : f32 to vector<32x512xf32>
    %48 = arith.maximumf %46, %47 : vector<32x512xf32>
    %c0_21 = arith.constant 0 : index
    %c0_22 = arith.constant 0 : index
    %49 = vector.load %arg7[%c0_21, %c0_22] : memref<32x512xf32, #tpu.memory_space<vmem>>, vector<32x512xf32>
    tpu.vector_store %arg7[%c0_21, %c0_22], %48 {strides = array<i32>} : memref<32x512xf32, #tpu.memory_space<vmem>>, vector<32x512xf32>,
    return
  }
  func.func @transform_0(%arg0: i32) -> (i32, i32) {
    %c0_i32 = arith.constant 0 : i32
    %c0_i32_0 = arith.constant 0 : i32
    return %c0_i32, %arg0 : i32, i32
  }
  func.func @transform_1(%arg0: i32) -> (i32, i32) {
    %c0_i32 = arith.constant 0 : i32
    %c0_i32_0 = arith.constant 0 : i32
    %c0_i32_1 = arith.constant 0 : i32
    return %c0_i32, %c0_i32_0 : i32, i32
  }
  func.func @transform_2(%arg0: i32) -> (i32, i32) {
    %c0_i32 = arith.constant 0 : i32
    %c0_i32_0 = arith.constant 0 : i32
    %c0_i32_1 = arith.constant 0 : i32
    return %c0_i32, %c0_i32_0 : i32, i32
  }
  func.func @transform_3(%arg0: i32) -> (i32, i32) {
    %c0_i32 = arith.constant 0 : i32
    %c0_i32_0 = arith.constant 0 : i32
    %c0_i32_1 = arith.constant 0 : i32
    return %c0_i32, %c0_i32_0 : i32, i32
  }
  func.func @transform_4(%arg0: i32) -> (i32, i32) {
    %c0_i32 = arith.constant 0 : i32
    %c0_i32_0 = arith.constant 0 : i32
    %c0_i32_1 = arith.constant 0 : i32
    return %c0_i32, %c0_i32_0 : i32, i32
  }
  func.func @transform_5(%arg0: i32) -> (i32, i32) {
    %c0_i32 = arith.constant 0 : i32
    %c0_i32_0 = arith.constant 0 : i32
    %c0_i32_1 = arith.constant 0 : i32
    return %c0_i32, %c0_i32_0 : i32, i32
  }
  func.func @transform_6(%arg0: i32) -> (i32, i32) {
    %c0_i32 = arith.constant 0 : i32
    %c0_i32_0 = arith.constant 0 : i32
    return %c0_i32, %arg0 : i32, i32
  }
}

</mosaic_0001>

<llo_original>
// kernel: tpu_custom_call.1
$region0: #{tpu_custom_call.1}
  #allocation0 [shape = 'u32[]', space=smem, size = 0x4, offset = 0x4, fixed_abs, tag = 'smem constant byte address 0x4 - core index']
  #allocation1 [shape = 'u32[144,128]{1,0:T(1,128)}', space=vmem, size = 0x12000, scoped, tag = 'internal scratch']
  %s0 = inlined_call_operand.hbm [shape: bf16[4,512], index: 0, kind: input, shape index: {}]
  %s1 = inlined_call_operand.vmem [shape: bf16[8,4], index: 1, kind: input, shape index: {}]
  %s2 = inlined_call_operand.vmem [shape: f32[8,1], index: 2, kind: input, shape index: {}]
  %s3 = inlined_call_operand.hbm [shape: bf16[32,72], index: 3, kind: input, shape index: {}]
  %s4 = inlined_call_operand.vmem [shape: f32[32,1], index: 4, kind: input, shape index: {}]
  %s5 = inlined_call_operand.vmem [shape: f32[9,512], index: 5, kind: input, shape index: {}]
  %s6 = inlined_call_operand.hbm [shape: f32[32,512], index: 6, kind: output, shape index: {}]
  %s7 = sld [smem:[#allocation0]]
  $region42: #{tpu_custom_call.1} parent=0
    _
  %s9 = ssub.s32 1, %s7
  %s10 = scalar_select 0, %s9, %s7
  $region1: #{tpu_custom_call.1} parent=0
    #allocation2 [shape = 'u8[4096]{0}', space=vmem, size = 0x1000, scoped, tag = 'input window, operand 0, single buffered']
    #allocation3 [shape = 's32[1]{0}', space=sflag, size = 0x4, scoped, tag = 'scoped memory for tpu_custom_call.1']
    #allocation4 [shape = 's32[1]{0}', space=sflag, size = 0x4, scoped, tag = 'scoped memory for tpu_custom_call.1']
    #allocation5 [shape = 'u8[8192]{0}', space=vmem, size = 0x2000, scoped, tag = 'input window, operand 3, single buffered']
    #allocation6 [shape = 's32[1]{0}', space=sflag, size = 0x4, scoped, tag = 'scoped memory for tpu_custom_call.1']
    #allocation7 [shape = 'u8[65536]{0}', space=vmem, size = 0x10000, scoped, tag = 'output window, operand 0, single buffered']
    %11 = vsyncpa [#allocation3], 0
    %12 = vsyncpa [#allocation6], 0
    %13 = vsyncpa [#allocation4], 0
    // Predicated region
    $region2: #{tpu_custom_call.1} parent=1 // pred_check
      _
    $region3: #{tpu_custom_call.1} parent=1 // pred_check_branch
      %15 = sbr.rel (0) target = $region5
    $region4: #{tpu_custom_call.1} parent=1 // pred_region
      %s17 = ssub.s32 128, 128
      %18 = vsyncadd [#allocation3], %s17
      %s20 = sshll.u32 [#allocation2], 4
      %s21 = int_to_ptr.vmem [resolvable:$true] %s20
      %23 = dma.hbm_to_vmem [thread:$0]  %s0, 128, %s21, [#allocation3]
    $region5: #{tpu_custom_call.1} parent=1 // pred_fallthru
      _
    // Predicated region
    $region6: #{tpu_custom_call.1} parent=1 // pred_check
      _
    $region7: #{tpu_custom_call.1} parent=1 // pred_check_branch
      %25 = sbr.rel (0) target = $region9
    $region8: #{tpu_custom_call.1} parent=1 // pred_region
      _
    $region9: #{tpu_custom_call.1} parent=1 // pred_fallthru
      _
    // Predicated region
    $region10: #{tpu_custom_call.1} parent=1 // pred_check
      _
    $region11: #{tpu_custom_call.1} parent=1 // pred_check_branch
      %27 = sbr.rel (0) target = $region13
    $region12: #{tpu_custom_call.1} parent=1 // pred_region
      _
    $region13: #{tpu_custom_call.1} parent=1 // pred_fallthru
      _
    // Predicated region
    $region14: #{tpu_custom_call.1} parent=1 // pred_check
      _
    $region15: #{tpu_custom_call.1} parent=1 // pred_check_branch
      %29 = sbr.rel (0) target = $region17
    $region16: #{tpu_custom_call.1} parent=1 // pred_region
      %s31 = ssub.s32 256, 256
      %32 = vsyncadd [#allocation6], %s31
      %s33 = sshll.u32 [#allocation5], 4
      %s34 = int_to_ptr.vmem [resolvable:$true] %s33
      %39 = dma.hbm_to_vmem [thread:$0]  %s3, 256, %s34, [#allocation6], 64, 64, 4
    $region17: #{tpu_custom_call.1} parent=1 // pred_fallthru
      _
    // Predicated region
    $region18: #{tpu_custom_call.1} parent=1 // pred_check
      _
    $region19: #{tpu_custom_call.1} parent=1 // pred_check_branch
      %41 = sbr.rel (0) target = $region21
    $region20: #{tpu_custom_call.1} parent=1 // pred_region
      _
    $region21: #{tpu_custom_call.1} parent=1 // pred_fallthru
      _
    // Predicated region
    $region22: #{tpu_custom_call.1} parent=1 // pred_check
      _
    $region23: #{tpu_custom_call.1} parent=1 // pred_check_branch
      %43 = sbr.rel (0) target = $region25
    $region24: #{tpu_custom_call.1} parent=1 // pred_region
      _
    $region25: #{tpu_custom_call.1} parent=1 // pred_fallthru
      _
    // Predicated region
    $region26: #{tpu_custom_call.1} parent=1 // pred_check
      _
    $region27: #{tpu_custom_call.1} parent=1 // pred_check_branch
      %45 = sbr.rel (0) target = $region29
    $region28: #{tpu_custom_call.1} parent=1 // pred_region
      %46 = dma.done [#allocation3], 128
    $region29: #{tpu_custom_call.1} parent=1 // pred_fallthru
      _
    // Predicated region
    $region30: #{tpu_custom_call.1} parent=1 // pred_check
      _
    $region31: #{tpu_custom_call.1} parent=1 // pred_check_branch
      %48 = sbr.rel (0) target = $region33
    $region32: #{tpu_custom_call.1} parent=1 // pred_region
      %49 = dma.done [#allocation6], 256
    $region33: #{tpu_custom_call.1} parent=1 // pred_fallthru
      _
    %v51 = vld [vmem:[%s1] sm:$0xf]
    %v52 = vld [vmem:[#allocation2] sm:$0xff]
    %v53 = vld [vmem:[%s2] sm:$0xff]
    %55 = vset.pattern.permute.xlu0 0
    %56 = vperm.xlu0 %55, %v53
    %v57 = vpop.permute.xlu0 %56
    %v60 = vcombine.high %v52, %v52
    %v62 = vunpack.c.l.s4 1983009808
    %v63 = vunpack.c.0.s8 %v62
    %v64 = vlaneseq
    %v65 = vshrl.u32 %v64, 7
    %v66 = vsub.s32 %v63, %v65
    %v67 = vrot.slane %v52, %v66
    %v69 = vunpack.c.l.s4 1983009808
    %v70 = vunpack.c.0.s8 %v69
    %v71 = vlaneseq
    %v72 = vshrl.u32 %v71, 7
    %v73 = vsub.s32 %v70, %v72
    %v74 = vrot.slane %v60, %v73
    %v75 = vcombine.high %v67, %v67
    %v76 = vcombine.high %v74, %v74
    %vm77 = vcmask 31744
    %v79 = vsel %vm77, %v51, 0
    %vm81 = vcmask 1041408
    %v83 = vsel %vm81, %v67, 0
    %v86 = vsel %vm81, %v75, 0
    %v89 = vsel %vm81, %v74, 0
    %v92 = vsel %vm81, %v76, 0
    %94 = vmatprep.subr.bf16.mxu0 %v86
    %95 = vmatpush1.bf16.msra.mxu0 %v83
    %96 = vmatprep.subr.bf16.mxu0 0
    %97 = vmatpush1.bf16.msra.mxu0 0
    %98 = vmatprep.subr.bf16.mxu0 0
    %99 = vmatpush1.bf16.msra.mxu0 0
    %100 = vmatprep.subr.bf16.mxu0 0
    %101 = vmatpush1.bf16.msra.mxu0 0
    %102 = vmatprep.subr.bf16.mxu0 0
    %103 = vmatpush1.bf16.msra.mxu0 0
    %104 = vmatprep.subr.bf16.mxu0 0
    %105 = vmatpush1.bf16.msra.mxu0 0
    %106 = vmatprep.subr.bf16.mxu0 0
    %107 = vmatpush1.bf16.msra.mxu0 0
    %108 = vmatprep.subr.bf16.mxu0 0
    %109 = vmatpush1.bf16.msra.mxu0 0
    %110 = vmatprep.subr.bf16.mxu0 0
    %111 = vmatpush1.bf16.msra.mxu0 0
    %112 = vmatprep.subr.bf16.mxu0 0
    %113 = vmatpush1.bf16.msra.mxu0 0
    %114 = vmatprep.subr.bf16.mxu0 0
    %115 = vmatpush1.bf16.msra.mxu0 0
    %116 = vmatprep.subr.bf16.mxu0 0
    %117 = vmatpush1.bf16.msra.mxu0 0
    %118 = vmatprep.subr.bf16.mxu0 0
    %119 = vmatpush1.bf16.msra.mxu0 0
    %120 = vmatprep.subr.bf16.mxu0 0
    %121 = vmatpush1.bf16.msra.mxu0 0
    %122 = vmatprep.subr.bf16.mxu0 0
    %123 = vmatpush1.bf16.msra.mxu0 0
    %124 = vmatprep.subr.bf16.mxu0 0
    %125 = vmatpush1.bf16.msra.mxu0 0
    %126 = vmatprep.mubr.bf16.mxu0 0
    %127 = vmatmul.mubr.bf16.gmra.mrb[0].mxu0 %v79
    %v128 = vpop.f32.mrb[0].mxu0
    %v129 = vadd.f32 %v57, %v128
    %v130 = vpop.f32.mrb[0].mxu0
    %v131 = vadd.f32 %v57, %v130
    %v132 = vpop.f32.mrb[0].mxu0
    %v133 = vpop.f32.mrb[0].mxu0
    %134 = vdwg.mxu0
    %135 = vmatprep.subr.bf16.mxu0 %v92
    %136 = vmatpush1.bf16.msra.mxu0 %v89
    %137 = vmatprep.subr.bf16.mxu0 0
    %138 = vmatpush1.bf16.msra.mxu0 0
    %139 = vmatprep.subr.bf16.mxu0 0
    %140 = vmatpush1.bf16.msra.mxu0 0
    %141 = vmatprep.subr.bf16.mxu0 0
    %142 = vmatpush1.bf16.msra.mxu0 0
    %143 = vmatprep.subr.bf16.mxu0 0
    %144 = vmatpush1.bf16.msra.mxu0 0
    %145 = vmatprep.subr.bf16.mxu0 0
    %146 = vmatpush1.bf16.msra.mxu0 0
    %147 = vmatprep.subr.bf16.mxu0 0
    %148 = vmatpush1.bf16.msra.mxu0 0
    %149 = vmatprep.subr.bf16.mxu0 0
    %150 = vmatpush1.bf16.msra.mxu0 0
    %151 = vmatprep.subr.bf16.mxu0 0
    %152 = vmatpush1.bf16.msra.mxu0 0
    %153 = vmatprep.subr.bf16.mxu0 0
    %154 = vmatpush1.bf16.msra.mxu0 0
    %155 = vmatprep.subr.bf16.mxu0 0
    %156 = vmatpush1.bf16.msra.mxu0 0
    %157 = vmatprep.subr.bf16.mxu0 0
    %158 = vmatpush1.bf16.msra.mxu0 0
    %159 = vmatprep.subr.bf16.mxu0 0
    %160 = vmatpush1.bf16.msra.mxu0 0
    %161 = vmatprep.subr.bf16.mxu0 0
    %162 = vmatpush1.bf16.msra.mxu0 0
    %163 = vmatprep.subr.bf16.mxu0 0
    %164 = vmatpush1.bf16.msra.mxu0 0
    %165 = vmatprep.subr.bf16.mxu0 0
    %166 = vmatpush1.bf16.msra.mxu0 0
    %167 = vmatprep.mubr.bf16.mxu0 0
    %168 = vmatmul.mubr.bf16.gmra.mrb[0].mxu0 %v79
    %v169 = vpop.f32.mrb[0].mxu0
    %v170 = vadd.f32 %v57, %v169
    %v171 = vpop.f32.mrb[0].mxu0
    %v172 = vadd.f32 %v57, %v171
    %v173 = vpop.f32.mrb[0].mxu0
    %v174 = vpop.f32.mrb[0].mxu0
    %175 = vdwg.mxu0
    %v176 = vmax.f32 %v129, 0.0
    %v177 = vmax.f32 %v131, 0.0
    %v178 = vmax.f32 %v170, 0.0
    %v179 = vmax.f32 %v172, 0.0
    %180 = vrot.lane.b32.xlu0 %v176, 17
    %v181 = vpop.permute.xlu0 %180
    %182 = vrot.lane.b32.xlu0 %v177, 17
    %v183 = vpop.permute.xlu0 %182
    %184 = vrot.lane.b32.xlu0 %v178, 17
    %v185 = vpop.permute.xlu0 %184
    %186 = vrot.lane.b32.xlu0 %v179, 17
    %v187 = vpop.permute.xlu0 %186
    %v188 = vlaneseq
    %v189 = vand.u32 %v188, 127
    %vm190 = vcmp.lt.s32.totalorder %v189, 17
    %v191 = vsel %vm190, %v185, %v187
    %v192 = vsel %vm190, %v183, %v185
    %v193 = vsel %vm190, %v181, %v183
    %v194 = vsel %vm190, %v187, %v181
    %v195 = vld [vmem:[%s5] ss:$8 sm:$0xf]
    %v197 = vlaneseq
    %v198 = vshrl.u32 %v197, 7
    %v199 = vsub.s32 0, %v198
    %v200 = vrot.slane %v195, %v199
    %v201 = vlaneseq
    %v202 = vshrl.u32 %v201, 7
    %v203 = vsub.s32 1, %v202
    %v204 = vrot.slane %v195, %v203
    %v205 = vlaneseq
    %v206 = vshrl.u32 %v205, 7
    %v207 = vsub.s32 2, %v206
    %v208 = vrot.slane %v195, %v207
    %v209 = vlaneseq
    %v210 = vshrl.u32 %v209, 7
    %v211 = vsub.s32 3, %v210
    %v212 = vrot.slane %v195, %v211
    %v217 = vmul.f32 %v194, %v200
    %v218 = vmul.f32 %v193, %v204
    %v219 = vmul.f32 %v192, %v208
    %v220 = vmul.f32 %v191, %v212
    %221 = vrot.lane.b32.xlu0 %v176, 16
    %v222 = vpop.permute.xlu0 %221
    %223 = vrot.lane.b32.xlu0 %v177, 16
    %v224 = vpop.permute.xlu0 %223
    %225 = vrot.lane.b32.xlu0 %v178, 16
    %v226 = vpop.permute.xlu0 %225
    %227 = vrot.lane.b32.xlu0 %v179, 16
    %v228 = vpop.permute.xlu0 %227
    %vm229 = vcmp.lt.s32.totalorder %v189, 16
    %v230 = vsel %vm229, %v226, %v228
    %v231 = vsel %vm229, %v224, %v226
    %v232 = vsel %vm229, %v222, %v224
    %v233 = vsel %vm229, %v228, %v222
    %s234 = scalar_lea.vmem %s5, 1
    %v235 = vld [vmem:[%s234] ss:$8 sm:$0xf]
    %v237 = vlaneseq
    %v238 = vshrl.u32 %v237, 7
    %v239 = vsub.s32 0, %v238
    %v240 = vrot.slane %v235, %v239
    %v241 = vlaneseq
    %v242 = vshrl.u32 %v241, 7
    %v243 = vsub.s32 1, %v242
    %v244 = vrot.slane %v235, %v243
    %v245 = vlaneseq
    %v246 = vshrl.u32 %v245, 7
    %v247 = vsub.s32 2, %v246
    %v248 = vrot.slane %v235, %v247
    %v249 = vlaneseq
    %v250 = vshrl.u32 %v249, 7
    %v251 = vsub.s32 3, %v250
    %v252 = vrot.slane %v235, %v251
    %v257 = vmul.f32 %v233, %v240
    %v258 = vmul.f32 %v232, %v244
    %v259 = vmul.f32 %v231, %v248
    %v260 = vmul.f32 %v230, %v252
    %261 = vrot.lane.b32.xlu0 %v176, 15
    %v262 = vpop.permute.xlu0 %261
    %263 = vrot.lane.b32.xlu0 %v177, 15
    %v264 = vpop.permute.xlu0 %263
    %265 = vrot.lane.b32.xlu0 %v178, 15
    %v266 = vpop.permute.xlu0 %265
    %267 = vrot.lane.b32.xlu0 %v179, 15
    %v268 = vpop.permute.xlu0 %267
    %vm269 = vcmp.lt.s32.totalorder %v189, 15
    %v270 = vsel %vm269, %v266, %v268
    %v271 = vsel %vm269, %v264, %v266
    %v272 = vsel %vm269, %v262, %v264
    %v273 = vsel %vm269, %v268, %v262
    %s274 = scalar_lea.vmem %s5, 2
    %v275 = vld [vmem:[%s274] ss:$8 sm:$0xf]
    %v277 = vlaneseq
    %v278 = vshrl.u32 %v277, 7
    %v279 = vsub.s32 0, %v278
    %v280 = vrot.slane %v275, %v279
    %v281 = vlaneseq
    %v282 = vshrl.u32 %v281, 7
    %v283 = vsub.s32 1, %v282
    %v284 = vrot.slane %v275, %v283
    %v285 = vlaneseq
    %v286 = vshrl.u32 %v285, 7
    %v287 = vsub.s32 2, %v286
    %v288 = vrot.slane %v275, %v287
    %v289 = vlaneseq
    %v290 = vshrl.u32 %v289, 7
    %v291 = vsub.s32 3, %v290
    %v292 = vrot.slane %v275, %v291
    %v297 = vmul.f32 %v273, %v280
    %v298 = vmul.f32 %v272, %v284
    %v299 = vmul.f32 %v271, %v288
    %v300 = vmul.f32 %v270, %v292
    %301 = vrot.lane.b32.xlu0 %v176, 1
    %v302 = vpop.permute.xlu0 %301
    %303 = vrot.lane.b32.xlu0 %v177, 1
    %v304 = vpop.permute.xlu0 %303
    %305 = vrot.lane.b32.xlu0 %v178, 1
    %v306 = vpop.permute.xlu0 %305
    %307 = vrot.lane.b32.xlu0 %v179, 1
    %v308 = vpop.permute.xlu0 %307
    %vm309 = vcmp.lt.s32.totalorder %v189, 1
    %v310 = vsel %vm309, %v306, %v308
    %v311 = vsel %vm309, %v304, %v306
    %v312 = vsel %vm309, %v302, %v304
    %v313 = vsel %vm309, %v308, %v302
    %s314 = scalar_lea.vmem %s5, 3
    %v315 = vld [vmem:[%s314] ss:$8 sm:$0xf]
    %v317 = vlaneseq
    %v318 = vshrl.u32 %v317, 7
    %v319 = vsub.s32 0, %v318
    %v320 = vrot.slane %v315, %v319
    %v321 = vlaneseq
    %v322 = vshrl.u32 %v321, 7
    %v323 = vsub.s32 1, %v322
    %v324 = vrot.slane %v315, %v323
    %v325 = vlaneseq
    %v326 = vshrl.u32 %v325, 7
    %v327 = vsub.s32 2, %v326
    %v328 = vrot.slane %v315, %v327
    %v329 = vlaneseq
    %v330 = vshrl.u32 %v329, 7
    %v331 = vsub.s32 3, %v330
    %v332 = vrot.slane %v315, %v331
    %v337 = vmul.f32 %v313, %v320
    %v338 = vmul.f32 %v312, %v324
    %v339 = vmul.f32 %v311, %v328
    %v340 = vmul.f32 %v310, %v332
    %341 = vrot.lane.b32.xlu0 %v176, 127
    %v342 = vpop.permute.xlu0 %341
    %343 = vrot.lane.b32.xlu0 %v177, 127
    %v344 = vpop.permute.xlu0 %343
    %345 = vrot.lane.b32.xlu0 %v178, 127
    %v346 = vpop.permute.xlu0 %345
    %347 = vrot.lane.b32.xlu0 %v179, 127
    %v348 = vpop.permute.xlu0 %347
    %vm349 = vcmp.lt.s32.totalorder %v189, 127
    %v350 = vsel %vm349, %v346, %v348
    %v351 = vsel %vm349, %v344, %v346
    %v352 = vsel %vm349, %v342, %v344
    %v353 = vsel %vm349, %v348, %v342
    %s354 = scalar_lea.vmem %s5, 5
    %v355 = vld [vmem:[%s354] ss:$8 sm:$0xf]
    %v357 = vlaneseq
    %v358 = vshrl.u32 %v357, 7
    %v359 = vsub.s32 0, %v358
    %v360 = vrot.slane %v355, %v359
    %v361 = vlaneseq
    %v362 = vshrl.u32 %v361, 7
    %v363 = vsub.s32 1, %v362
    %v364 = vrot.slane %v355, %v363
    %v365 = vlaneseq
    %v366 = vshrl.u32 %v365, 7
    %v367 = vsub.s32 2, %v366
    %v368 = vrot.slane %v355, %v367
    %v369 = vlaneseq
    %v370 = vshrl.u32 %v369, 7
    %v371 = vsub.s32 3, %v370
    %v372 = vrot.slane %v355, %v371
    %v377 = vmul.f32 %v352, %v360
    %v378 = vmul.f32 %v351, %v364
    %v379 = vmul.f32 %v350, %v368
    %v380 = vmul.f32 %v353, %v372
    %381 = vrot.lane.b32.xlu0 %v176, 113
    %v382 = vpop.permute.xlu0 %381
    %383 = vrot.lane.b32.xlu0 %v177, 113
    %v384 = vpop.permute.xlu0 %383
    %385 = vrot.lane.b32.xlu0 %v178, 113
    %v386 = vpop.permute.xlu0 %385
    %387 = vrot.lane.b32.xlu0 %v179, 113
    %v388 = vpop.permute.xlu0 %387
    %vm389 = vcmp.lt.s32.totalorder %v189, 113
    %v390 = vsel %vm389, %v386, %v388
    %v391 = vsel %vm389, %v384, %v386
    %v392 = vsel %vm389, %v382, %v384
    %v393 = vsel %vm389, %v388, %v382
    %s394 = scalar_lea.vmem %s5, 6
    %v395 = vld [vmem:[%s394] ss:$8 sm:$0xf]
    %v397 = vlaneseq
    %v398 = vshrl.u32 %v397, 7
    %v399 = vsub.s32 0, %v398
    %v400 = vrot.slane %v395, %v399
    %v401 = vlaneseq
    %v402 = vshrl.u32 %v401, 7
    %v403 = vsub.s32 1, %v402
    %v404 = vrot.slane %v395, %v403
    %v405 = vlaneseq
    %v406 = vshrl.u32 %v405, 7
    %v407 = vsub.s32 2, %v406
    %v408 = vrot.slane %v395, %v407
    %v409 = vlaneseq
    %v410 = vshrl.u32 %v409, 7
    %v411 = vsub.s32 3, %v410
    %v412 = vrot.slane %v395, %v411
    %v417 = vmul.f32 %v392, %v400
    %v418 = vmul.f32 %v391, %v404
    %v419 = vmul.f32 %v390, %v408
    %v420 = vmul.f32 %v393, %v412
    %421 = vrot.lane.b32.xlu0 %v176, 112
    %v422 = vpop.permute.xlu0 %421
    %423 = vrot.lane.b32.xlu0 %v177, 112
    %v424 = vpop.permute.xlu0 %423
    %425 = vrot.lane.b32.xlu0 %v178, 112
    %v426 = vpop.permute.xlu0 %425
    %427 = vrot.lane.b32.xlu0 %v179, 112
    %v428 = vpop.permute.xlu0 %427
    %vm429 = vcmp.lt.s32.totalorder %v189, 112
    %v430 = vsel %vm429, %v426, %v428
    %v431 = vsel %vm429, %v424, %v426
    %v432 = vsel %vm429, %v422, %v424
    %v433 = vsel %vm429, %v428, %v422
    %s434 = scalar_lea.vmem %s5, 7
    %v435 = vld [vmem:[%s434] ss:$8 sm:$0xf]
    %v437 = vlaneseq
    %v438 = vshrl.u32 %v437, 7
    %v439 = vsub.s32 0, %v438
    %v440 = vrot.slane %v435, %v439
    %v441 = vlaneseq
    %v442 = vshrl.u32 %v441, 7
    %v443 = vsub.s32 1, %v442
    %v444 = vrot.slane %v435, %v443
    %v445 = vlaneseq
    %v446 = vshrl.u32 %v445, 7
    %v447 = vsub.s32 2, %v446
    %v448 = vrot.slane %v435, %v447
    %v449 = vlaneseq
    %v450 = vshrl.u32 %v449, 7
    %v451 = vsub.s32 3, %v450
    %v452 = vrot.slane %v435, %v451
    %v457 = vmul.f32 %v432, %v440
    %v458 = vmul.f32 %v431, %v444
    %v459 = vmul.f32 %v430, %v448
    %v460 = vmul.f32 %v433, %v452
    %461 = vrot.lane.b32.xlu0 %v176, 111
    %v462 = vpop.permute.xlu0 %461
    %463 = vrot.lane.b32.xlu0 %v177, 111
    %v464 = vpop.permute.xlu0 %463
    %465 = vrot.lane.b32.xlu0 %v178, 111
    %v466 = vpop.permute.xlu0 %465
    %467 = vrot.lane.b32.xlu0 %v179, 111
    %v468 = vpop.permute.xlu0 %467
    %vm469 = vcmp.lt.s32.totalorder %v189, 111
    %v470 = vsel %vm469, %v466, %v468
    %v471 = vsel %vm469, %v464, %v466
    %v472 = vsel %vm469, %v462, %v464
    %v473 = vsel %vm469, %v468, %v462
    %s474 = scalar_lea.vmem %s5, 32
    %v475 = vld [vmem:[%s474] ss:$8 sm:$0xf]
    %v477 = vlaneseq
    %v478 = vshrl.u32 %v477, 7
    %v479 = vsub.s32 0, %v478
    %v480 = vrot.slane %v475, %v479
    %v481 = vlaneseq
    %v482 = vshrl.u32 %v481, 7
    %v483 = vsub.s32 1, %v482
    %v484 = vrot.slane %v475, %v483
    %v485 = vlaneseq
    %v486 = vshrl.u32 %v485, 7
    %v487 = vsub.s32 2, %v486
    %v488 = vrot.slane %v475, %v487
    %v489 = vlaneseq
    %v490 = vshrl.u32 %v489, 7
    %v491 = vsub.s32 3, %v490
    %v492 = vrot.slane %v475, %v491
    %v497 = vmul.f32 %v472, %v480
    %v498 = vmul.f32 %v471, %v484
    %v499 = vmul.f32 %v470, %v488
    %v500 = vmul.f32 %v473, %v492
    %v501 = vpack.c.bf16 %v257, %v217
    %v502 = vpack.c.bf16 %v258, %v218
    %v503 = vpack.c.bf16 %v259, %v219
    %v504 = vpack.c.bf16 %v260, %v220
    %v505 = vpack.c.bf16 %v337, %v297
    %v506 = vpack.c.bf16 %v338, %v298
    %v507 = vpack.c.bf16 %v339, %v299
    %v508 = vpack.c.bf16 %v340, %v300
    %v509 = vpack.c.bf16 %v377, %v176
    %v510 = vpack.c.bf16 %v378, %v177
    %v511 = vpack.c.bf16 %v379, %v178
    %v512 = vpack.c.bf16 %v380, %v179
    %v513 = vpack.c.bf16 %v457, %v417
    %v514 = vpack.c.bf16 %v458, %v418
    %v515 = vpack.c.bf16 %v459, %v419
    %v516 = vpack.c.bf16 %v460, %v420
    %v517 = vpack.c.bf16 %v497, %v497
    %v518 = vpack.c.bf16 %v498, %v498
    %v519 = vpack.c.bf16 %v499, %v499
    %v520 = vpack.c.bf16 %v500, %v500
    %v521 = vld [vmem:[#allocation5] sm:$0xf]
    %v522 = vld [vmem:[#allocation5 + $0x4] sm:$0xf]
    %v523 = vld [vmem:[#allocation5 + $0x8] sm:$0xf]
    %v524 = vld [vmem:[#allocation5 + $0xc] sm:$0xf]
    %v525 = vld [vmem:[%s4] sm:$0xff]
    %v526 = vld [vmem:[%s4 + $0x8] sm:$0xff]
    %v527 = vld [vmem:[%s4 + $0x10] sm:$0xff]
    %v528 = vld [vmem:[%s4 + $0x18] sm:$0xff]
    %530 = vset.pattern.permute.xlu0 0
    %531 = vperm.xlu0 %530, %v525
    %v532 = vpop.permute.xlu0 %531
    %535 = vset.pattern.permute.xlu0 0
    %536 = vperm.xlu0 %535, %v526
    %v537 = vpop.permute.xlu0 %536
    %540 = vset.pattern.permute.xlu0 0
    %541 = vperm.xlu0 %540, %v527
    %v542 = vpop.permute.xlu0 %541
    %545 = vset.pattern.permute.xlu0 0
    %546 = vperm.xlu0 %545, %v528
    %v547 = vpop.permute.xlu0 %546
    %v553 = vunpack.c.l.b16 %v521
    %v554 = vunpack.c.l.b16 %v522
    %v555 = vunpack.c.l.b16 %v523
    %v556 = vunpack.c.l.b16 %v524
    %v557 = vpack.c.b16 %v554, %v553
    %v558 = vpack.c.b16 %v556, %v555
    %vm559 = vcmask 588800
    %v561 = vsel %vm559, %v557, 0
    %v564 = vsel %vm559, %v558, 0
    %vm566 = vcmask 1043456
    %v568 = vsel %vm566, %v517, 0
    %v571 = vsel %vm566, %v518, 0
    %v574 = vsel %vm566, %v519, 0
    %v577 = vsel %vm566, %v520, 0
    %579 = vmatprep.subr.bf16.mxu0 %v502
    %580 = vmatpush1.bf16.msra.mxu0 %v501
    %581 = vmatprep.subr.bf16.mxu0 %v506
    %582 = vmatpush1.bf16.msra.mxu0 %v505
    %583 = vmatprep.subr.bf16.mxu0 %v510
    %584 = vmatpush1.bf16.msra.mxu0 %v509
    %585 = vmatprep.subr.bf16.mxu0 %v514
    %586 = vmatpush1.bf16.msra.mxu0 %v513
    %587 = vmatprep.subr.bf16.mxu0 %v571
    %588 = vmatpush1.bf16.msra.mxu0 %v568
    %589 = vmatprep.subr.bf16.mxu0 0
    %590 = vmatpush1.bf16.msra.mxu0 0
    %591 = vmatprep.subr.bf16.mxu0 0
    %592 = vmatpush1.bf16.msra.mxu0 0
    %593 = vmatprep.subr.bf16.mxu0 0
    %594 = vmatpush1.bf16.msra.mxu0 0
    %595 = vmatprep.subr.bf16.mxu0 0
    %596 = vmatpush1.bf16.msra.mxu0 0
    %597 = vmatprep.subr.bf16.mxu0 0
    %598 = vmatpush1.bf16.msra.mxu0 0
    %599 = vmatprep.subr.bf16.mxu0 0
    %600 = vmatpush1.bf16.msra.mxu0 0
    %601 = vmatprep.subr.bf16.mxu0 0
    %602 = vmatpush1.bf16.msra.mxu0 0
    %603 = vmatprep.subr.bf16.mxu0 0
    %604 = vmatpush1.bf16.msra.mxu0 0
    %605 = vmatprep.subr.bf16.mxu0 0
    %606 = vmatpush1.bf16.msra.mxu0 0
    %607 = vmatprep.subr.bf16.mxu0 0
    %608 = vmatpush1.bf16.msra.mxu0 0
    %609 = vmatprep.subr.bf16.mxu0 0
    %610 = vmatpush1.bf16.msra.mxu0 0
    %611 = vmatprep.mubr.bf16.mxu0 0
    %612 = vmatmul.mubr.bf16.gmra.mrb[0].mxu0 %v561
    %v613 = vpop.f32.mrb[0].mxu0
    %v614 = vadd.f32 %v532, %v613
    %v615 = vpop.f32.mrb[0].mxu0
    %v616 = vadd.f32 %v532, %v615
    %v617 = vpop.f32.mrb[0].mxu0
    %v618 = vadd.f32 %v537, %v617
    %v619 = vpop.f32.mrb[0].mxu0
    %v620 = vadd.f32 %v537, %v619
    %621 = vmatprep.mubr.bf16.mxu0 0
    %622 = vmatmul.mubr.bf16.gmra.mrb[0].mxu0 %v564
    %v623 = vpop.f32.mrb[0].mxu0
    %v624 = vadd.f32 %v542, %v623
    %v625 = vpop.f32.mrb[0].mxu0
    %v626 = vadd.f32 %v542, %v625
    %v627 = vpop.f32.mrb[0].mxu0
    %v628 = vadd.f32 %v547, %v627
    %v629 = vpop.f32.mrb[0].mxu0
    %v630 = vadd.f32 %v547, %v629
    %631 = vdwg.mxu0
    %632 = vmatprep.subr.bf16.mxu0 %v504
    %633 = vmatpush1.bf16.msra.mxu0 %v503
    %634 = vmatprep.subr.bf16.mxu0 %v508
    %635 = vmatpush1.bf16.msra.mxu0 %v507
    %636 = vmatprep.subr.bf16.mxu0 %v512
    %637 = vmatpush1.bf16.msra.mxu0 %v511
    %638 = vmatprep.subr.bf16.mxu0 %v516
    %639 = vmatpush1.bf16.msra.mxu0 %v515
    %640 = vmatprep.subr.bf16.mxu0 %v577
    %641 = vmatpush1.bf16.msra.mxu0 %v574
    %642 = vmatprep.subr.bf16.mxu0 0
    %643 = vmatpush1.bf16.msra.mxu0 0
    %644 = vmatprep.subr.bf16.mxu0 0
    %645 = vmatpush1.bf16.msra.mxu0 0
    %646 = vmatprep.subr.bf16.mxu0 0
    %647 = vmatpush1.bf16.msra.mxu0 0
    %648 = vmatprep.subr.bf16.mxu0 0
    %649 = vmatpush1.bf16.msra.mxu0 0
    %650 = vmatprep.subr.bf16.mxu0 0
    %651 = vmatpush1.bf16.msra.mxu0 0
    %652 = vmatprep.subr.bf16.mxu0 0
    %653 = vmatpush1.bf16.msra.mxu0 0
    %654 = vmatprep.subr.bf16.mxu0 0
    %655 = vmatpush1.bf16.msra.mxu0 0
    %656 = vmatprep.subr.bf16.mxu0 0
    %657 = vmatpush1.bf16.msra.mxu0 0
    %658 = vmatprep.subr.bf16.mxu0 0
    %659 = vmatpush1.bf16.msra.mxu0 0
    %660 = vmatprep.subr.bf16.mxu0 0
    %661 = vmatpush1.bf16.msra.mxu0 0
    %662 = vmatprep.subr.bf16.mxu0 0
    %663 = vmatpush1.bf16.msra.mxu0 0
    %664 = vmatprep.mubr.bf16.mxu0 0
    %665 = vmatmul.mubr.bf16.gmra.mrb[0].mxu0 %v561
    %v666 = vpop.f32.mrb[0].mxu0
    %v667 = vadd.f32 %v532, %v666
    %v668 = vpop.f32.mrb[0].mxu0
    %v669 = vadd.f32 %v532, %v668
    %v670 = vpop.f32.mrb[0].mxu0
    %v671 = vadd.f32 %v537, %v670
    %v672 = vpop.f32.mrb[0].mxu0
    %v673 = vadd.f32 %v537, %v672
    %674 = vmatprep.mubr.bf16.mxu0 0
    %675 = vmatmul.mubr.bf16.gmra.mrb[0].mxu0 %v564
    %v676 = vpop.f32.mrb[0].mxu0
    %v677 = vadd.f32 %v542, %v676
    %v678 = vpop.f32.mrb[0].mxu0
    %v679 = vadd.f32 %v542, %v678
    %v680 = vpop.f32.mrb[0].mxu0
    %v681 = vadd.f32 %v547, %v680
    %v682 = vpop.f32.mrb[0].mxu0
    %v683 = vadd.f32 %v547, %v682
    %684 = vdwg.mxu0
    %v685 = vmax.f32 %v614, 0.0
    %v686 = vmax.f32 %v616, 0.0
    %v687 = vmax.f32 %v667, 0.0
    %v688 = vmax.f32 %v669, 0.0
    %v689 = vmax.f32 %v618, 0.0
    %v690 = vmax.f32 %v620, 0.0
    %v691 = vmax.f32 %v671, 0.0
    %v692 = vmax.f32 %v673, 0.0
    %v693 = vmax.f32 %v624, 0.0
    %v694 = vmax.f32 %v626, 0.0
    %v695 = vmax.f32 %v677, 0.0
    %v696 = vmax.f32 %v679, 0.0
    %v697 = vmax.f32 %v628, 0.0
    %v698 = vmax.f32 %v630, 0.0
    %v699 = vmax.f32 %v681, 0.0
    %v700 = vmax.f32 %v683, 0.0
    %701 = vst [vmem:[#allocation7] sm:$0xff] %v685
    %702 = vst [vmem:[#allocation7 + $0x8] sm:$0xff] %v686
    %703 = vst [vmem:[#allocation7 + $0x10] sm:$0xff] %v687
    %704 = vst [vmem:[#allocation7 + $0x18] sm:$0xff] %v688
    %705 = vst [vmem:[#allocation7 + $0x20] sm:$0xff] %v689
    %706 = vst [vmem:[#allocation7 + $0x28] sm:$0xff] %v690
    %707 = vst [vmem:[#allocation7 + $0x30] sm:$0xff] %v691
    %708 = vst [vmem:[#allocation7 + $0x38] sm:$0xff] %v692
    %709 = vst [vmem:[#allocation7 + $0x40] sm:$0xff] %v693
    %710 = vst [vmem:[#allocation7 + $0x48] sm:$0xff] %v694
    %711 = vst [vmem:[#allocation7 + $0x50] sm:$0xff] %v695
    %712 = vst [vmem:[#allocation7 + $0x58] sm:$0xff] %v696
    %713 = vst [vmem:[#allocation7 + $0x60] sm:$0xff] %v697
    %714 = vst [vmem:[#allocation7 + $0x68] sm:$0xff] %v698
    %715 = vst [vmem:[#allocation7 + $0x70] sm:$0xff] %v699
    %716 = vst [vmem:[#allocation7 + $0x78] sm:$0xff] %v700
    // Predicated region
    $region34: #{tpu_custom_call.1} parent=1 // pred_check
      _
    $region35: #{tpu_custom_call.1} parent=1 // pred_check_branch
      %718 = sbr.rel (0) target = $region37
    $region36: #{tpu_custom_call.1} parent=1 // pred_region
      %s720 = ssub.s32 2048, 2048
      %721 = vsyncadd [#allocation4], %s720
      %s722 = sshll.u32 [#allocation7], 4
      %s723 = int_to_ptr.vmem [resolvable:$true] %s722
      %728 = dma.vmem_to_hbm [thread:$0]  %s723, 2048, %s6, [#allocation4], 512, 512, 32
    $region37: #{tpu_custom_call.1} parent=1 // pred_fallthru
      _
    // Predicated region
    $region38: #{tpu_custom_call.1} parent=1 // pred_check
      _
    $region39: #{tpu_custom_call.1} parent=1 // pred_check_branch
      %730 = sbr.rel (0) target = $region41
    $region40: #{tpu_custom_call.1} parent=1 // pred_region
      %731 = dma.done [#allocation4], 2048
    $region41: #{tpu_custom_call.1} parent=1 // pred_fallthru
      _
    %732 = vsyncpa [#allocation3], 1
    %733 = vsyncpa [#allocation6], 1
    %734 = vsyncpa [#allocation4], 1

</llo_original>
